<compile_context>
chip_gen: v5e
topology: v5e:2x2
jax: 0.10.0
libtpu: 0.0.40
codegen_flags: <defaults>
</compile_context>

<pallas_src>
import functools

import jax
import jax.numpy as jnp
import numpy as np
from jax.experimental import pallas as pl
from jax.experimental.pallas import tpu as pltpu


def _soft_ce_kernel(x_ref, t_ref, o_ref, m_x, s_x, m_t, z_t, cr, *,
                    inv_temperature, n_rows, c_total, row_tile, c_tile,
                    mask_rows, mask_cols):
    """One (row_tile, c_tile) block; class axis is reduced online across k."""
    i = pl.program_id(0)          # batch tile  ("parallel")
    k = pl.program_id(1)          # class chunk ("arbitrary", innermost)
    nk = pl.num_programs(1)

    @pl.when(k == 0)
    def _():
        m_x[...] = jnp.full(m_x.shape, -jnp.inf, jnp.float32)
        m_t[...] = jnp.full(m_t.shape, -jnp.inf, jnp.float32)
        s_x[...] = jnp.zeros(s_x.shape, jnp.float32)
        z_t[...] = jnp.zeros(z_t.shape, jnp.float32)
        cr[...] = jnp.zeros(cr.shape, jnp.float32)

    x = x_ref[...].astype(jnp.float32)                      # (TB, TC)
    t = t_ref[...].astype(jnp.float32) * inv_temperature    # (TB, TC)

    if mask_cols:
        col_ids = jax.lax.broadcasted_iota(jnp.int32, x.shape, 1) + k * c_tile
        valid = col_ids < c_total
        x_m = jnp.where(valid, x, -jnp.inf)   # for max / exp (exp(-inf) = 0)
        t_m = jnp.where(valid, t, -jnp.inf)
        x_c = jnp.where(valid, x, 0.0)        # for the cross term
    else:
        x_m, t_m, x_c = x, t, x

    # Online log-sum-exp of the student logits.
    m_x_old = m_x[...]
    m_x_new = jnp.maximum(m_x_old, jnp.max(x_m, axis=-1, keepdims=True))
    s_x[...] = (s_x[...] * jnp.exp(m_x_old - m_x_new)
                + jnp.sum(jnp.exp(x_m - m_x_new), axis=-1, keepdims=True))
    m_x[...] = m_x_new

    # Online unnormalized teacher weights + teacher-weighted student logits.
    m_t_old = m_t[...]
    m_t_new = jnp.maximum(m_t_old, jnp.max(t_m, axis=-1, keepdims=True))
    alpha = jnp.exp(m_t_old - m_t_new)
    t_exp = jnp.exp(t_m - m_t_new)
    z_t[...] = z_t[...] * alpha + jnp.sum(t_exp, axis=-1, keepdims=True)
    cr[...] = cr[...] * alpha + jnp.sum(t_exp * x_c, axis=-1, keepdims=True)
    m_t[...] = m_t_new

    @pl.when(k == nk - 1)
    def _():
        lse_x = m_x[...] + jnp.log(s_x[...])                           # (TB, 1)
        # loss_row = sum_c softmax(t)_c * (lse_x - x_c) = lse_x - cross / z_t.
        # approx=False keeps 1e-5-level accuracy; it is only a (TB,1) op.
        per_row = lse_x - cr[...] * pl.reciprocal(z_t[...], approx=False)
        if mask_rows:
            row_ids = (jax.lax.broadcasted_iota(jnp.int32, per_row.shape, 0)
                       + i * row_tile)
            per_row = jnp.where(row_ids < n_rows, per_row, 0.0)
        o_ref[...] = jnp.full(o_ref.shape, jnp.sum(per_row), jnp.float32)


def soft_target_cross_entropy_T(x, target, temperature=2.0):
    """Pallas TPU implementation of SoftTargetCrossEntropy_T.forward."""
    assert x.ndim == 2 and x.shape == target.shape
    n, c = x.shape
    ix = x.dtype.itemsize
    it = target.dtype.itemsize

    # --- Generation-aware VMEM budget (128 MiB on v5e/v6e, 64 MiB on v7x). ---
    try:
        info = pltpu.get_tpu_info()
        vmem_cap = int(getattr(info, "vmem_capacity_bytes", 64 << 20))
    except Exception:
        vmem_cap = 64 << 20
    if vmem_cap <= 0:
        vmem_cap = 64 << 20
    budget = (vmem_cap * 3) // 4

    # VMEM bytes per (row, class) element of one block: double-buffered x and
    # target at their real dtype width + ~4 live f32 (TB, TC) temporaries.
    per_elem = 2 * (ix + it) + 4 * 4
    max_block_elems = max(budget // per_elem, 8 * 128)

    def _rdown8(v):
        return max(8, (int(v) // 8) * 8)

    def _rup8(v):
        return max(8, -(-int(v) // 8) * 8)

    # Batch-tile caps: never exceed the (8-rounded) batch, and keep >=2 grid
    # steps whenever the batch allows so both v7x TensorCores get work.
    row_cap = _rup8(n)
    if n > 8:
        row_cap = min(row_cap, _rup8(pl.cdiv(n, 2)))

    target_block_bytes = 4 << 20  # ~4 MiB per input block: near HBM roofline

    if 8 * c <= max_block_elems:
        # Full class rows fit in VMEM: single class pass.
        c_tile = c
        row_tile = min(target_block_bytes // max(c * ix, 1),
                       max_block_elems // c, 2048, row_cap)
        row_tile = _rdown8(row_tile)
        # TODO(synk): for C << 128 lane occupancy is C/128; a lane-dense
        # repacking (batch along lanes) in the wrapper would recover that.
    else:
        # Very large C: tile the class axis (online reduction in the kernel)
        # so the batch tile stays large and VMEM stays bounded by the budget.
        row_tile = _rdown8(min(256, row_cap))
        c_tile = max(128, ((max_block_elems // row_tile) // 128) * 128)
        while row_tile > 8 and row_tile * c_tile > max_block_elems:
            row_tile = _rdown8(row_tile // 2)
            c_tile = max(128, ((max_block_elems // row_tile) // 128) * 128)

    num_row_tiles = pl.cdiv(n, row_tile)
    num_c_tiles = pl.cdiv(c, c_tile)
    mask_rows = (n % row_tile) != 0
    mask_cols = (c % c_tile) != 0

    footprint = (row_tile * c_tile * per_elem      # pipelined inputs + temps
                 + 5 * row_tile * 128 * 4          # (TB,1) f32 scratch (lane-padded)
                 + 2 * 8 * 128 * 4                 # partial-sum output block
                 + (2 << 20))                      # compiler slack
    vmem_limit = int(min(max(footprint + (4 << 20), 32 << 20),
                         (vmem_cap * 9) // 10))

    kernel = functools.partial(
        _soft_ce_kernel,
        inv_temperature=float(1.0 / float(temperature)),
        n_rows=n, c_total=c, row_tile=row_tile, c_tile=c_tile,
        mask_rows=mask_rows, mask_cols=mask_cols,
    )

    partials = pl.pallas_call(
        kernel,
        out_shape=jax.ShapeDtypeStruct((num_row_tiles, 8, 128), jnp.float32),
        grid=(num_row_tiles, num_c_tiles),
        in_specs=[
            pl.BlockSpec((row_tile, c_tile), lambda i, k: (i, k)),
            pl.BlockSpec((row_tile, c_tile), lambda i, k: (i, k)),
        ],
        out_specs=pl.BlockSpec((1, 8, 128), lambda i, k: (i, 0, 0)),
        scratch_shapes=[pltpu.VMEM((row_tile, 1), jnp.float32)] * 5,
        compiler_params=pltpu.CompilerParams(
            # Batch tiles are independent -> megacore sharding on v7x;
            # class axis is a reduction -> "arbitrary", innermost.
            dimension_semantics=("parallel", "arbitrary"),
            vmem_limit_bytes=vmem_limit,
        ),
    )(x, target)

    # Final reduction + mean over the TRUE (unpadded) batch size.
    return jnp.sum(partials[:, 0, 0]) / jnp.float32(n)


def _reference(x, target, temperature=2.0):
    soft = jax.nn.softmax(target / temperature, axis=1)
    loss = jnp.sum(-soft * jax.nn.log_softmax(x, axis=-1), axis=-1)
    return jnp.mean(loss)


if __name__ == "__main__":
    key = jax.random.PRNGKey(0)
    k1, k2 = jax.random.split(key)
    N, C = 16, 32  # small shapes: (batch, num_classes) logits
    x = jax.random.normal(k1, (N, C), dtype=jnp.float32)
    target = jax.random.normal(k2, (N, C), dtype=jnp.float32)

    T = 2.0
    loss = soft_target_cross_entropy_T(x, target, temperature=T)
    loss = jax.block_until_ready(loss)

    ref = _reference(x, target, temperature=T)
    assert np.allclose(np.asarray(loss), np.asarray(ref), rtol=1e-5, atol=1e-5), (
        float(loss),
        float(ref),
    )
    print("KERNEL_OK")
</pallas_src>

<mosaic_0001>
module attributes {stable_mosaic.version = 11 : i64} {
  func.func @_soft_ce_kernel(%arg0: i32, %arg1: i32, %arg2: memref<8x32xf32, #tpu.memory_space<vmem>>, %arg3: memref<8x32xf32, #tpu.memory_space<vmem>>, %arg4: memref<1x8x128xf32, #tpu.memory_space<vmem>>, %arg5: memref<8x1xf32, #tpu.memory_space<vmem>>, %arg6: memref<8x1xf32, #tpu.memory_space<vmem>>, %arg7: memref<8x1xf32, #tpu.memory_space<vmem>>, %arg8: memref<8x1xf32, #tpu.memory_space<vmem>>, %arg9: memref<8x1xf32, #tpu.memory_space<vmem>>) attributes {dimension_semantics = [#tpu.dimension_semantics<parallel>, #tpu.dimension_semantics<arbitrary>], iteration_bounds = array<i64: 2, 1>, scalar_prefetch = 0 : i64, scratch_operands = 5 : i64, tpu.core_type = #tpu.core_type<tc>, window_params = [{transform_indices = @transform_0, window_bounds = array<i64: 8, 32>}, {transform_indices = @transform_1, window_bounds = array<i64: 8, 32>}, {transform_indices = @transform_2, window_bounds = array<i64: 1, 8, 128>}]} {
    %c0_i32 = arith.constant 0 : i32
    %0 = arith.cmpi eq, %arg1, %c0_i32 : i32
    %1 = arith.extui %0 : i1 to i32
    %c0_i32_0 = arith.constant 0 : i32
    %2 = arith.cmpi ne, %1, %c0_i32_0 : i32
    scf.if %2 {
      %cst_31 = arith.constant 0xFF800000 : f32
      %49 = vector.broadcast %cst_31 : f32 to vector<8x1xf32>
      %c0_32 = arith.constant 0 : index
      %c0_33 = arith.constant 0 : index
      %50 = vector.load %arg5[%c0_32, %c0_33] : memref<8x1xf32, #tpu.memory_space<vmem>>, vector<8x1xf32>
      tpu.vector_store %arg5[%c0_32, %c0_33], %49 {strides = array<i32>} : memref<8x1xf32, #tpu.memory_space<vmem>>, vector<8x1xf32>,
      %cst_34 = arith.constant 0xFF800000 : f32
      %51 = vector.broadcast %cst_34 : f32 to vector<8x1xf32>
      %c0_35 = arith.constant 0 : index
      %c0_36 = arith.constant 0 : index
      %52 = vector.load %arg7[%c0_35, %c0_36] : memref<8x1xf32, #tpu.memory_space<vmem>>, vector<8x1xf32>
      tpu.vector_store %arg7[%c0_35, %c0_36], %51 {strides = array<i32>} : memref<8x1xf32, #tpu.memory_space<vmem>>, vector<8x1xf32>,
      %cst_37 = arith.constant 0.000000e+00 : f32
      %53 = vector.broadcast %cst_37 : f32 to vector<8x1xf32>
      %c0_38 = arith.constant 0 : index
      %c0_39 = arith.constant 0 : index
      %54 = vector.load %arg6[%c0_38, %c0_39] : memref<8x1xf32, #tpu.memory_space<vmem>>, vector<8x1xf32>
      tpu.vector_store %arg6[%c0_38, %c0_39], %53 {strides = array<i32>} : memref<8x1xf32, #tpu.memory_space<vmem>>, vector<8x1xf32>,
      %cst_40 = arith.constant 0.000000e+00 : f32
      %55 = vector.broadcast %cst_40 : f32 to vector<8x1xf32>
      %c0_41 = arith.constant 0 : index
      %c0_42 = arith.constant 0 : index
      %56 = vector.load %arg8[%c0_41, %c0_42] : memref<8x1xf32, #tpu.memory_space<vmem>>, vector<8x1xf32>
      tpu.vector_store %arg8[%c0_41, %c0_42], %55 {strides = array<i32>} : memref<8x1xf32, #tpu.memory_space<vmem>>, vector<8x1xf32>,
      %cst_43 = arith.constant 0.000000e+00 : f32
      %57 = vector.broadcast %cst_43 : f32 to vector<8x1xf32>
      %c0_44 = arith.constant 0 : index
      %c0_45 = arith.constant 0 : index
      %58 = vector.load %arg9[%c0_44, %c0_45] : memref<8x1xf32, #tpu.memory_space<vmem>>, vector<8x1xf32>
      tpu.vector_store %arg9[%c0_44, %c0_45], %57 {strides = array<i32>} : memref<8x1xf32, #tpu.memory_space<vmem>>, vector<8x1xf32>,
    } else {
    }
    %c0 = arith.constant 0 : index
    %c0_1 = arith.constant 0 : index
    %3 = vector.load %arg2[%c0, %c0_1] : memref<8x32xf32, #tpu.memory_space<vmem>>, vector<8x32xf32>
    %c0_2 = arith.constant 0 : index
    %c0_3 = arith.constant 0 : index
    %4 = vector.load %arg3[%c0_2, %c0_3] : memref<8x32xf32, #tpu.memory_space<vmem>>, vector<8x32xf32>
    %cst = arith.constant 5.000000e-01 : f32
    %5 = vector.broadcast %cst : f32 to vector<8x32xf32>
    %6 = arith.mulf %4, %5 : vector<8x32xf32>
    %c0_4 = arith.constant 0 : index
    %c0_5 = arith.constant 0 : index
    %7 = vector.load %arg5[%c0_4, %c0_5] : memref<8x1xf32, #tpu.memory_space<vmem>>, vector<8x1xf32>
    %cst_6 = arith.constant dense<0xFF800000> : vector<8xf32>
    %8 = vector.multi_reduction <maximumf>, %3, %cst_6 [1] : vector<8x32xf32> to vector<8xf32>
    %9 = vector.shape_cast %8 : vector<8xf32> to vector<8x1xf32>
    %10 = arith.maximumf %7, %9 : vector<8x1xf32>
    %c0_7 = arith.constant 0 : index
    %c0_8 = arith.constant 0 : index
    %11 = vector.load %arg6[%c0_7, %c0_8] : memref<8x1xf32, #tpu.memory_space<vmem>>, vector<8x1xf32>
    %12 = arith.subf %7, %10 : vector<8x1xf32>
    %13 = math.exp %12 : vector<8x1xf32>
    %14 = arith.mulf %11, %13 : vector<8x1xf32>
    %15 = vector.broadcast %10 : vector<8x1xf32> to vector<8x32xf32>
    %16 = arith.subf %3, %15 : vector<8x32xf32>
    %17 = math.exp %16 : vector<8x32xf32>
    %cst_9 = arith.constant dense<0.000000e+00> : vector<8xf32>
    %18 = vector.multi_reduction <add>, %17, %cst_9 [1] : vector<8x32xf32> to vector<8xf32>
    %19 = vector.shape_cast %18 : vector<8xf32> to vector<8x1xf32>
    %20 = arith.addf %14, %19 : vector<8x1xf32>
    %c0_10 = arith.constant 0 : index
    %c0_11 = arith.constant 0 : index
    %21 = vector.load %arg6[%c0_10, %c0_11] : memref<8x1xf32, #tpu.memory_space<vmem>>, vector<8x1xf32>
    tpu.vector_store %arg6[%c0_10, %c0_11], %20 {strides = array<i32>} : memref<8x1xf32, #tpu.memory_space<vmem>>, vector<8x1xf32>,
    %c0_12 = arith.constant 0 : index
    %c0_13 = arith.constant 0 : index
    %22 = vector.load %arg5[%c0_12, %c0_13] : memref<8x1xf32, #tpu.memory_space<vmem>>, vector<8x1xf32>
    tpu.vector_store %arg5[%c0_12, %c0_13], %10 {strides = array<i32>} : memref<8x1xf32, #tpu.memory_space<vmem>>, vector<8x1xf32>,
    %c0_14 = arith.constant 0 : index
    %c0_15 = arith.constant 0 : index
    %23 = vector.load %arg7[%c0_14, %c0_15] : memref<8x1xf32, #tpu.memory_space<vmem>>, vector<8x1xf32>
    %cst_16 = arith.constant dense<0xFF800000> : vector<8xf32>
    %24 = vector.multi_reduction <maximumf>, %6, %cst_16 [1] : vector<8x32xf32> to vector<8xf32>
    %25 = vector.shape_cast %24 : vector<8xf32> to vector<8x1xf32>
    %26 = arith.maximumf %23, %25 : vector<8x1xf32>
    %27 = arith.subf %23, %26 : vector<8x1xf32>
    %28 = math.exp %27 : vector<8x1xf32>
    %29 = vector.broadcast %26 : vector<8x1xf32> to vector<8x32xf32>
    %30 = arith.subf %6, %29 : vector<8x32xf32>
    %31 = math.exp %30 : vector<8x32xf32>
    %c0_17 = arith.constant 0 : index
    %c0_18 = arith.constant 0 : index
    %32 = vector.load %arg8[%c0_17, %c0_18] : memref<8x1xf32, #tpu.memory_space<vmem>>, vector<8x1xf32>
    %33 = arith.mulf %32, %28 : vector<8x1xf32>
    %cst_19 = arith.constant dense<0.000000e+00> : vector<8xf32>
    %34 = vector.multi_reduction <add>, %31, %cst_19 [1] : vector<8x32xf32> to vector<8xf32>
    %35 = vector.shape_cast %34 : vector<8xf32> to vector<8x1xf32>
    %36 = arith.addf %33, %35 : vector<8x1xf32>
    %c0_20 = arith.constant 0 : index
    %c0_21 = arith.constant 0 : index
    %37 = vector.load %arg8[%c0_20, %c0_21] : memref<8x1xf32, #tpu.memory_space<vmem>>, vector<8x1xf32>
    tpu.vector_store %arg8[%c0_20, %c0_21], %36 {strides = array<i32>} : memref<8x1xf32, #tpu.memory_space<vmem>>, vector<8x1xf32>,
    %c0_22 = arith.constant 0 : index
    %c0_23 = arith.constant 0 : index
    %38 = vector.load %arg9[%c0_22, %c0_23] : memref<8x1xf32, #tpu.memory_space<vmem>>, vector<8x1xf32>
    %39 = arith.mulf %38, %28 : vector<8x1xf32>
    %40 = arith.mulf %31, %3 : vector<8x32xf32>
    %cst_24 = arith.constant dense<0.000000e+00> : vector<8xf32>
    %41 = vector.multi_reduction <add>, %40, %cst_24 [1] : vector<8x32xf32> to vector<8xf32>
    %42 = vector.shape_cast %41 : vector<8xf32> to vector<8x1xf32>
    %43 = arith.addf %39, %42 : vector<8x1xf32>
    %c0_25 = arith.constant 0 : index
    %c0_26 = arith.constant 0 : index
    %44 = vector.load %arg9[%c0_25, %c0_26] : memref<8x1xf32, #tpu.memory_space<vmem>>, vector<8x1xf32>
    tpu.vector_store %arg9[%c0_25, %c0_26], %43 {strides = array<i32>} : memref<8x1xf32, #tpu.memory_space<vmem>>, vector<8x1xf32>,
    %c0_27 = arith.constant 0 : index
    %c0_28 = arith.constant 0 : index
    %45 = vector.load %arg7[%c0_27, %c0_28] : memref<8x1xf32, #tpu.memory_space<vmem>>, vector<8x1xf32>
    tpu.vector_store %arg7[%c0_27, %c0_28], %26 {strides = array<i32>} : memref<8x1xf32, #tpu.memory_space<vmem>>, vector<8x1xf32>,
    %c0_i32_29 = arith.constant 0 : i32
    %46 = arith.cmpi eq, %arg1, %c0_i32_29 : i32
    %47 = arith.extui %46 : i1 to i32
    %c0_i32_30 = arith.constant 0 : i32
    %48 = arith.cmpi ne, %47, %c0_i32_30 : i32
    scf.if %48 {
      %c0_31 = arith.constant 0 : index
      %c0_32 = arith.constant 0 : index
      %49 = vector.load %arg5[%c0_31, %c0_32] : memref<8x1xf32, #tpu.memory_space<vmem>>, vector<8x1xf32>
      %c0_33 = arith.constant 0 : index
      %c0_34 = arith.constant 0 : index
      %50 = vector.load %arg6[%c0_33, %c0_34] : memref<8x1xf32, #tpu.memory_space<vmem>>, vector<8x1xf32>
      %51 = math.log %50 : vector<8x1xf32>
      %52 = arith.addf %49, %51 : vector<8x1xf32>
      %c0_35 = arith.constant 0 : index
      %c0_36 = arith.constant 0 : index
      %53 = vector.load %arg9[%c0_35, %c0_36] : memref<8x1xf32, #tpu.memory_space<vmem>>, vector<8x1xf32>
      %c0_37 = arith.constant 0 : index
      %c0_38 = arith.constant 0 : index
      %54 = vector.load %arg8[%c0_37, %c0_38] : memref<8x1xf32, #tpu.memory_space<vmem>>, vector<8x1xf32>
      %55 = tpu.reciprocal %54 : vector<8x1xf32> -> vector<8x1xf32>
      %56 = arith.mulf %53, %55 : vector<8x1xf32>
      %57 = arith.subf %52, %56 : vector<8x1xf32>
      %58 = vector.shape_cast %57 : vector<8x1xf32> to vector<1x8x1xf32>
      %cst_39 = arith.constant dense<0.000000e+00> : vector<1xf32>
      %59 = vector.multi_reduction <add>, %58, %cst_39 [1, 2] : vector<1x8x1xf32> to vector<1xf32>
      %60 = vector.shape_cast %59 : vector<1xf32> to vector<1x1x1xf32>
      %61 = vector.extract %60[0, 0, 0] : f32 from vector<1x1x1xf32>
      %62 = vector.broadcast %61 : f32 to vector<1x8x128xf32>
      %c0_40 = arith.constant 0 : index
      %c0_41 = arith.constant 0 : index
      %c0_42 = arith.constant 0 : index
      %63 = vector.load %arg4[%c0_40, %c0_41, %c0_42] : memref<1x8x128xf32, #tpu.memory_space<vmem>>, vector<1x8x128xf32>
      tpu.vector_store %arg4[%c0_40, %c0_41, %c0_42], %62 {strides = array<i32>} : memref<1x8x128xf32, #tpu.memory_space<vmem>>, vector<1x8x128xf32>,
    } else {
    }
    return
  }
  func.func @transform_0(%arg0: i32, %arg1: i32) -> (i32, i32) {
    %c0_i32 = arith.constant 0 : i32
    return %arg0, %arg1 : i32, i32
  }
  func.func @transform_1(%arg0: i32, %arg1: i32) -> (i32, i32) {
    %c0_i32 = arith.constant 0 : i32
    return %arg0, %arg1 : i32, i32
  }
  func.func @transform_2(%arg0: i32, %arg1: i32) -> (i32, i32, i32) {
    %c0_i32 = arith.constant 0 : i32
    %c0_i32_0 = arith.constant 0 : i32
    %c0_i32_1 = arith.constant 0 : i32
    return %arg0, %c0_i32, %c0_i32_0 : i32, i32, i32
  }
}

</mosaic_0001>

<llo_original>
// kernel: tpu_custom_call.1
$region0: #{tpu_custom_call.1}
  #allocation0 [shape = 'u32[]', space=smem, size = 0x4, offset = 0x4, fixed_abs, tag = 'smem constant byte address 0x4 - core index']
  #allocation1 [shape = 'u32[72,128]{1,0:T(1,128)}', space=vmem, size = 0x9000, scoped, tag = 'internal scratch']
  #allocation2 [shape = 'f32[8,1]{1,0:T(8,128)}', space=vmem, size = 0x1000, scoped, tag = 'scratch operand']
  #allocation3 [shape = 'f32[8,1]{1,0:T(8,128)}', space=vmem, size = 0x1000, scoped, tag = 'scratch operand']
  #allocation4 [shape = 'f32[8,1]{1,0:T(8,128)}', space=vmem, size = 0x1000, scoped, tag = 'scratch operand']
  #allocation5 [shape = 'f32[8,1]{1,0:T(8,128)}', space=vmem, size = 0x1000, scoped, tag = 'scratch operand']
  #allocation6 [shape = 'f32[8,1]{1,0:T(8,128)}', space=vmem, size = 0x1000, scoped, tag = 'scratch operand']
  %s0 = inlined_call_operand.hbm [shape: f32[16,32], index: 0, kind: input, shape index: {}]
  %s1 = inlined_call_operand.hbm [shape: f32[16,32], index: 1, kind: input, shape index: {}]
  %s2 = inlined_call_operand.hbm [shape: f32[2,8,128], index: 2, kind: output, shape index: {}]
  %s3 = sld [smem:[#allocation0]]
  $region57: #{tpu_custom_call.1} parent=0
    _
  %s5 = ssub.s32 1, %s3
  %s6 = scalar_select 0, %s5, %s3
  $region1: #{tpu_custom_call.1} parent=0
    #allocation7 [shape = 'u8[8192]{0}', space=vmem, size = 0x2000, scoped, tag = 'input window, operand 0']
    #allocation8 [shape = 's32[2]{0}', space=sflag, size = 0x8, scoped, tag = 'scoped memory for tpu_custom_call.1']
    #allocation9 [shape = 's32[2]{0}', space=sflag, size = 0x8, scoped, tag = 'scoped memory for tpu_custom_call.1']
    #allocation10 [shape = 'u8[8192]{0}', space=vmem, size = 0x2000, scoped, tag = 'input window, operand 1']
    #allocation11 [shape = 's32[2]{0}', space=sflag, size = 0x8, scoped, tag = 'scoped memory for tpu_custom_call.1']
    #allocation12 [shape = 'u8[8192]{0}', space=vmem, size = 0x2000, scoped, tag = 'output window, operand 0']
    %7 = vsyncpa [#allocation8], 0
    %s8 = scalar_lea.sflag [#allocation8], 1
    %9 = vsyncpa %s8, 0
    %10 = vsyncpa [#allocation11], 0
    %s11 = scalar_lea.sflag [#allocation11], 1
    %12 = vsyncpa %s11, 0
    %13 = vsyncpa [#allocation9], 0
    %s14 = scalar_lea.sflag [#allocation9], 1
    %15 = vsyncpa %s14, 0
    loop: start=0, step=1, limit=4
    $region2: #{tpu_custom_call.1} parent=1 // loop_pre_header
      _
    $region3: #{tpu_custom_call.1} parent=1 // loop_header
      %s17 = sphi 0, %s21
      %p18 = scmp.ge.s32.totalorder %s17, 4
      %s24 = sphi 0, %s36
      %s25 = sphi 0, %s32
      %s26 = sphi 0, %s24
      %s27 = sphi 0, %s25
      %s28 = sphi 0, %s26
      %s29 = sphi 0, %s27
      %s41 = sphi 0, %s43
      %s44 = sphi 0, %s41
      %s45 = sphi 0, %s44
      %s61 = sphi 0, %s45
      %s69 = sphi 0, %s71
      %s72 = sphi 0, %s69
      %s73 = sphi 0, %s72
      %s89 = sphi 0, %s73
      %s95 = sphi 0, %s97
      %s98 = sphi 0, %s95
      %s99 = sphi 0, %s98
      %s115 = sphi 0, %s99
    $region4: #{tpu_custom_call.1} parent=1 // loop_header_branch
      %20 = sbr.rel (%p18) target = $region8
    $region5: #{tpu_custom_call.1} parent=1 // loop_body
      %s22 = ssub.s32 %s17, 1
      %s23 = ssub.s32 %s17, 2
      %s30 = sadd.s32 1, %s25
      %p31 = scmp.ge.s32.totalorder %s30, 1
      %s32 = scalar_select %p31, 0, %s30
      %s33 = sadd.s32 1, %s24
      %s34 = scalar_select %p31, %s33, %s24
      %p35 = scmp.ge.s32.totalorder %s34, 2
      %s36 = scalar_select %p35, 0, %s34
      %s37 = ssub.s32 %s24, %s36
      %s38 = ssub.s32 %s25, %s32
      %s39 = sor.u32 %s37, %s38
      %p40 = scmp.eq.s32.totalorder %s39, 0
      %s42 = sadd.s32 %s41, 1
      %s43 = scalar_select %p40, %s41, %s42
      %p46 = pneg %p40
      %p47 = scmp.eq.s32.totalorder %s17, 1
      %p48 = por %p46, %p47
      %p49 = scmp.ne.s32.totalorder %s41, %s44
      %p50 = scmp.eq.s32.totalorder %s17, 0
      %p51 = por %p49, %p50
      %p52 = scmp.ne.s32.totalorder %s41, %s44
      %p53 = scmp.eq.s32.totalorder %s22, 1
      %p54 = por %p52, %p53
      %p55 = scmp.ne.s32.totalorder %s44, %s45
      %p56 = scmp.eq.s32.totalorder %s22, 0
      %p57 = por %p55, %p56
      %p58 = scmp.ne.s32.totalorder %s44, %s45
      %p59 = scmp.eq.s32.totalorder %s23, 1
      %p60 = por %p58, %p59
      %p62 = scmp.ne.s32.totalorder %s45, %s61
      %p63 = scmp.eq.s32.totalorder %s23, 0
      %p64 = por %p62, %p63
      %s65 = ssub.s32 %s24, %s36
      %s66 = ssub.s32 %s25, %s32
      %s67 = sor.u32 %s65, %s66
      %p68 = scmp.eq.s32.totalorder %s67, 0
      %s70 = sadd.s32 %s69, 1
      %s71 = scalar_select %p68, %s69, %s70
      %p74 = pneg %p68
      %p75 = scmp.eq.s32.totalorder %s17, 1
      %p76 = por %p74, %p75
      %p77 = scmp.ne.s32.totalorder %s69, %s72
      %p78 = scmp.eq.s32.totalorder %s17, 0
      %p79 = por %p77, %p78
      %p80 = scmp.ne.s32.totalorder %s69, %s72
      %p81 = scmp.eq.s32.totalorder %s22, 1
      %p82 = por %p80, %p81
      %p83 = scmp.ne.s32.totalorder %s72, %s73
      %p84 = scmp.eq.s32.totalorder %s22, 0
      %p85 = por %p83, %p84
      %p86 = scmp.ne.s32.totalorder %s72, %s73
      %p87 = scmp.eq.s32.totalorder %s23, 1
      %p88 = por %p86, %p87
      %p90 = scmp.ne.s32.totalorder %s73, %s89
      %p91 = scmp.eq.s32.totalorder %s23, 0
      %p92 = por %p90, %p91
      %s93 = ssub.s32 %s24, %s36
      %p94 = scmp.eq.s32.totalorder %s93, 0
      %s96 = sadd.s32 %s95, 1
      %s97 = scalar_select %p94, %s95, %s96
      %p100 = pneg %p94
      %p101 = scmp.eq.s32.totalorder %s17, 1
      %p102 = por %p100, %p101
      %p103 = scmp.ne.s32.totalorder %s95, %s98
      %p104 = scmp.eq.s32.totalorder %s17, 0
      %p105 = por %p103, %p104
      %p106 = scmp.ne.s32.totalorder %s95, %s98
      %p107 = scmp.eq.s32.totalorder %s22, 1
      %p108 = por %p106, %p107
      %p109 = scmp.ne.s32.totalorder %s98, %s99
      %p110 = scmp.eq.s32.totalorder %s22, 0
      %p111 = por %p109, %p110
      %p112 = scmp.ne.s32.totalorder %s98, %s99
      %p113 = scmp.eq.s32.totalorder %s23, 1
      %p114 = por %p112, %p113
      %p116 = scmp.ne.s32.totalorder %s99, %s115
      %p117 = scmp.eq.s32.totalorder %s23, 0
      %p118 = por %p116, %p117
      %p119 = scmp.le.s32.totalorder 1, %s17
      %p120 = scmp.lt.s32.totalorder %s17, 3
      %p121 = pnand %p119, %p120
      %p122 = pneg %p121
      // Predicated region
      $region9: #{tpu_custom_call.1} parent=5 // pred_check
        _
      $region10: #{tpu_custom_call.1} parent=5 // pred_check_branch
        %124 = sbr.rel (%p121) target = $region12
      $region11: #{tpu_custom_call.1} parent=5 // pred_region
        %s125 = ssub.s32 %s17, 1
      $region12: #{tpu_custom_call.1} parent=5 // pred_fallthru
        _
      %p126 = scmp.lt.s32.totalorder %s17, 2
      // Predicated region
      $region13: #{tpu_custom_call.1} parent=5 // pred_check
        %p127 = pneg %p126
      $region14: #{tpu_custom_call.1} parent=5 // pred_check_branch
        %129 = sbr.rel (%p127) target = $region16
      $region15: #{tpu_custom_call.1} parent=5 // pred_region
        // Predicated region
        $region17: #{tpu_custom_call.1} parent=15 // pred_check
          %p130 = pneg %p51
        $region18: #{tpu_custom_call.1} parent=15 // pred_check_branch
          %132 = sbr.rel (%p130) target = $region20
        $region19: #{tpu_custom_call.1} parent=15 // pred_region
          %s133 = sand.u32 %s41, 1
          %s134 = scalar_lea.sflag [#allocation8], %s133
          %s135 = sand.u32 %s41, 1
          %s136 = smul.addr %s135, 8
          %s137 = scalar_lea.vmem [#allocation7], %s136
          %139 = vsyncadd %s134, 0
          %s140 = sadd.s32 %s25, %s24
          %s141 = smul.addr %s140, 8
          %s142 = scalar_lea.hbm %s0, %s141
          %s144 = sshll.u32 %s142, 4
          %s145 = int_to_ptr.hbm [resolvable:$true] %s144
          %s146 = sshll.u32 %s137, 4
          %s147 = int_to_ptr.vmem [resolvable:$true] %s146
          %149 = dma.hbm_to_vmem [thread:$0]  %s145, 128, %s147, %s134
        $region20: #{tpu_custom_call.1} parent=15 // pred_fallthru
          _
        // Predicated region
        $region21: #{tpu_custom_call.1} parent=15 // pred_check
          %p150 = pneg %p79
        $region22: #{tpu_custom_call.1} parent=15 // pred_check_branch
          %152 = sbr.rel (%p150) target = $region24
        $region23: #{tpu_custom_call.1} parent=15 // pred_region
          %s153 = sand.u32 %s69, 1
          %s154 = scalar_lea.sflag [#allocation11], %s153
          %s155 = sand.u32 %s69, 1
          %s156 = smul.addr %s155, 8
          %s157 = scalar_lea.vmem [#allocation10], %s156
          %159 = vsyncadd %s154, 0
          %s160 = sadd.s32 %s25, %s24
          %s161 = smul.addr %s160, 8
          %s162 = scalar_lea.hbm %s1, %s161
          %s164 = sshll.u32 %s162, 4
          %s165 = int_to_ptr.hbm [resolvable:$true] %s164
          %s166 = sshll.u32 %s157, 4
          %s167 = int_to_ptr.vmem [resolvable:$true] %s166
          %169 = dma.hbm_to_vmem [thread:$0]  %s165, 128, %s167, %s154
        $region24: #{tpu_custom_call.1} parent=15 // pred_fallthru
          _
      $region16: #{tpu_custom_call.1} parent=5 // pred_fallthru
        _
      %p170 = scmp.le.s32.totalorder 1, %s17
      %p171 = scmp.lt.s32.totalorder %s17, 3
      %p172 = pnand %p170, %p171
      %p173 = pneg %p172
      // Predicated region
      $region25: #{tpu_custom_call.1} parent=5 // pred_check
        _
      $region26: #{tpu_custom_call.1} parent=5 // pred_check_branch
        %175 = sbr.rel (%p172) target = $region28
      $region27: #{tpu_custom_call.1} parent=5 // pred_region
        %s176 = ssub.s32 %s17, 1
        %s177 = sand.u32 %s44, 1
        %s178 = scalar_lea.sflag [#allocation8], %s177
        %s179 = sand.u32 %s44, 1
        %s180 = smul.addr %s179, 8
        %s181 = scalar_lea.vmem [#allocation7], %s180
        // Predicated region
        $region29: #{tpu_custom_call.1} parent=27 // pred_check
          %p182 = pneg %p57
        $region30: #{tpu_custom_call.1} parent=27 // pred_check_branch
          %184 = sbr.rel (%p182) target = $region32
        $region31: #{tpu_custom_call.1} parent=27 // pred_region
          %186 = dma.done %s178, 128
        $region32: #{tpu_custom_call.1} parent=27 // pred_fallthru
          _
        %s187 = sand.u32 %s72, 1
        %s188 = scalar_lea.sflag [#allocation11], %s187
        %s189 = sand.u32 %s72, 1
        %s190 = smul.addr %s189, 8
        %s191 = scalar_lea.vmem [#allocation10], %s190
        // Predicated region
        $region33: #{tpu_custom_call.1} parent=27 // pred_check
          %p192 = pneg %p85
        $region34: #{tpu_custom_call.1} parent=27 // pred_check_branch
          %194 = sbr.rel (%p192) target = $region36
        $region35: #{tpu_custom_call.1} parent=27 // pred_region
          %196 = dma.done %s188, 128
        $region36: #{tpu_custom_call.1} parent=27 // pred_fallthru
          _
        %s197 = sand.u32 %s44, 1
        %s198 = scalar_lea.sflag [#allocation8], %s197
        %s199 = sand.u32 %s44, 1
        %s200 = smul.addr %s199, 8
        %s201 = scalar_lea.vmem [#allocation7], %s200
        %p202 = pneg %p57
        %p203 = pneg %p54
        %s204 = sand.u32 %s72, 1
        %s205 = scalar_lea.sflag [#allocation11], %s204
        %s206 = sand.u32 %s72, 1
        %s207 = smul.addr %s206, 8
        %s208 = scalar_lea.vmem [#allocation10], %s207
        %p209 = pneg %p85
        %p210 = pneg %p82
        %p211 = pneg %p111
        %p212 = pneg %p108
        %s213 = sand.u32 %s98, 1
        %s214 = scalar_lea.sflag [#allocation9], %s213
        %s215 = sand.u32 %s98, 1
        %s216 = smul.addr %s215, 8
        %s217 = scalar_lea.vmem [#allocation12], %s216
        %p218 = scmp.eq.s32.totalorder %s27, 0
        // Predicated region
        $region37: #{tpu_custom_call.1} parent=27 // pred_check
          %p219 = pneg %p218
        $region38: #{tpu_custom_call.1} parent=27 // pred_check_branch
          %221 = sbr.rel (%p219) target = $region40
        $region39: #{tpu_custom_call.1} parent=27 // pred_region
          %vm222 = vcmask 7168
          %223 = vst.msk [vmem:[#allocation2] sm:$0xff] %vm222, -inf
          %224 = vst.msk [vmem:[#allocation4] sm:$0xff] %vm222, -inf
          %225 = vst.msk [vmem:[#allocation3] sm:$0xff] %vm222, 0.0
          %226 = vst.msk [vmem:[#allocation5] sm:$0xff] %vm222, 0.0
          %227 = vst.msk [vmem:[#allocation6] sm:$0xff] %vm222, 0.0
        $region40: #{tpu_custom_call.1} parent=27 // pred_fallthru
          _
        %v228 = vld [vmem:[%s181] sm:$0xff]
        %v229 = vld [vmem:[%s191] sm:$0xff]
        %v230 = vmul.f32 %v229, 0.5
        %v231 = vld [vmem:[#allocation2] sm:$0xff]
        %vm232 = vcmask 261120
        %v233 = vsel %vm232, %v228, -inf
        %234 = vmax.xlane.f32.xlu0 %v233
        %v235 = vpop.xlane.xlu0 %234
        %v236 = vmax.f32 %v231, %v235
        %v237 = vld [vmem:[#allocation3] sm:$0xff]
        %v238 = vsub.f32 %v231, %v236
        %v239 = vmul.f32 %v238, 1.442695
        %v240 = vpow.pop %v239
        %v241 = vmul.f32 %v237, %v240
        %243 = vset.pattern.permute.xlu0 0
        %244 = vperm.xlu0 %243, %v236
        %v245 = vpop.permute.xlu0 %244
        %v247 = vsub.f32 %v228, %v245
        %v248 = vmul.f32 %v247, 1.442695
        %v249 = vpow.pop %v248
        %v250 = vsel %vm232, %v249, 0.0
        %251 = vadd.xlane.f32.xlu0 %v250
        %v252 = vpop.xlane.xlu0 %251
        %v253 = vadd.f32 %v241, %v252
        %vm254 = vcmask 7168
        %255 = vst.msk [vmem:[#allocation3] sm:$0xff] %vm254, %v253
        %256 = vst.msk [vmem:[#allocation2] sm:$0xff] %vm254, %v236
        %v257 = vld [vmem:[#allocation4] sm:$0xff]
        %v258 = vsel %vm232, %v230, -inf
        %259 = vmax.xlane.f32.xlu0 %v258
        %v260 = vpop.xlane.xlu0 %259
        %v261 = vmax.f32 %v257, %v260
        %v262 = vsub.f32 %v257, %v261
        %v263 = vmul.f32 %v262, 1.442695
        %v264 = vpow.pop %v263
        %266 = vset.pattern.permute.xlu0 0
        %267 = vperm.xlu0 %266, %v261
        %v268 = vpop.permute.xlu0 %267
        %v270 = vsub.f32 %v230, %v268
        %v271 = vmul.f32 %v270, 1.442695
        %v272 = vpow.pop %v271
        %v273 = vld [vmem:[#allocation5] sm:$0xff]
        %v274 = vmul.f32 %v273, %v264
        %v275 = vsel %vm232, %v272, 0.0
        %276 = vadd.xlane.f32.xlu0 %v275
        %v277 = vpop.xlane.xlu0 %276
        %v278 = vadd.f32 %v274, %v277
        %279 = vst.msk [vmem:[#allocation5] sm:$0xff] %vm254, %v278
        %v280 = vld [vmem:[#allocation6] sm:$0xff]
        %v281 = vmul.f32 %v280, %v264
        %v282 = vmul.f32 %v272, %v228
        %v283 = vsel %vm232, %v282, 0.0
        %284 = vadd.xlane.f32.xlu0 %v283
        %v285 = vpop.xlane.xlu0 %284
        %v286 = vadd.f32 %v281, %v285
        %287 = vst.msk [vmem:[#allocation6] sm:$0xff] %vm254, %v286
        %288 = vst.msk [vmem:[#allocation4] sm:$0xff] %vm254, %v261
        // Predicated region
        $region41: #{tpu_custom_call.1} parent=27 // pred_check
          %p289 = pneg %p218
        $region42: #{tpu_custom_call.1} parent=27 // pred_check_branch
          %291 = sbr.rel (%p289) target = $region44
        $region43: #{tpu_custom_call.1} parent=27 // pred_region
          %v292 = vld [vmem:[#allocation2] sm:$0xff]
          %v293 = vld [vmem:[#allocation3] sm:$0xff]
          %v294 = vlog2.pop %v293
          %v295 = vmul.f32 %v294, 0.6931472
          %v296 = vadd.f32 %v292, %v295
          %v297 = vld [vmem:[#allocation6] sm:$0xff]
          %v298 = vld [vmem:[#allocation5] sm:$0xff]
          %v299 = vrcp.pop %v298
          %v300 = vmul.f32 %v298, %v299
          %v301 = vsub.f32 1.0, %v300
          %v302 = vmul.f32 %v299, %v301
          %v303 = vadd.f32 %v299, %v302
          %vm304 = vweird.f32 %v298
          %vm305 = vweird.f32 %v299
          %vm306 = vmor %vm304, %vm305
          %v307 = vsel %vm306, %v299, %v303
          %v308 = vand.u32 2147483647, %v298
          %vm309 = vcmp.eq.f32.partialorder %v308, 8.507059e+37
          %v310 = vand.u32 %v298, 2147483648
          %v311 = vor.u32 1.1754944e-38, %v310
          %v312 = vsel %vm309, %v311, %v307
          %v313 = vmul.f32 %v297, %v312
          %v314 = vsub.f32 %v296, %v313
          %v315 = vsel %vm254, %v314, 0.0
          %316 = vadd.xlane.f32.xlu0 %v315
          %v317 = vpop.xlane.xlu0 %316
          %v318 = vrot.slane %v317, 4
          %v319 = vadd.f32 %v317, %v318
          %v320 = vrot.slane %v319, 2
          %v321 = vadd.f32 %v319, %v320
          %v322 = vrot.slane %v321, 1
          %v323 = vadd.f32 %v321, %v322
          %s324 = vtos %v323
          %v325 = vstv %s324
          %326 = vst [vmem:[%s217] sm:$0xff] %v325
        $region44: #{tpu_custom_call.1} parent=27 // pred_fallthru
          _
        %s327 = sand.u32 %s98, 1
        %s328 = scalar_lea.sflag [#allocation9], %s327
        %s329 = sand.u32 %s98, 1
        %s330 = smul.addr %s329, 8
        %s331 = scalar_lea.vmem [#allocation12], %s330
        // Predicated region
        $region45: #{tpu_custom_call.1} parent=27 // pred_check
          %p332 = pneg %p108
        $region46: #{tpu_custom_call.1} parent=27 // pred_check_branch
          %334 = sbr.rel (%p332) target = $region48
        $region47: #{tpu_custom_call.1} parent=27 // pred_region
          %336 = vsyncadd %s328, 0
          %s337 = smul.addr %s26, 8
          %s338 = scalar_lea.hbm %s2, %s337
          %s340 = sshll.u32 %s331, 4
          %s341 = int_to_ptr.vmem [resolvable:$true] %s340
          %s342 = sshll.u32 %s338, 4
          %s343 = int_to_ptr.hbm [resolvable:$true] %s342
          %345 = dma.vmem_to_hbm [thread:$0]  %s341, 128, %s343, %s328
        $region48: #{tpu_custom_call.1} parent=27 // pred_fallthru
          _
      $region28: #{tpu_custom_call.1} parent=5 // pred_fallthru
        _
      %p346 = scmp.le.s32.totalorder 2, %s17
      // Predicated region
      $region49: #{tpu_custom_call.1} parent=5 // pred_check
        %p347 = pneg %p346
      $region50: #{tpu_custom_call.1} parent=5 // pred_check_branch
        %349 = sbr.rel (%p347) target = $region52
      $region51: #{tpu_custom_call.1} parent=5 // pred_region
        %s350 = ssub.s32 %s17, 2
        // Predicated region
        $region53: #{tpu_custom_call.1} parent=51 // pred_check
          %p351 = pneg %p114
        $region54: #{tpu_custom_call.1} parent=51 // pred_check_branch
          %353 = sbr.rel (%p351) target = $region56
        $region55: #{tpu_custom_call.1} parent=51 // pred_region
          %s354 = sand.u32 %s99, 1
          %s355 = scalar_lea.sflag [#allocation9], %s354
          %s356 = sand.u32 %s99, 1
          %s357 = smul.addr %s356, 8
          %s358 = scalar_lea.vmem [#allocation12], %s357
          %360 = dma.done %s355, 128
        $region56: #{tpu_custom_call.1} parent=51 // pred_fallthru
          _
      $region52: #{tpu_custom_call.1} parent=5 // pred_fallthru
        _
    $region6: #{tpu_custom_call.1} parent=1 // loop_footer
      %s21 = sadd.s32 1, %s17
    $region7: #{tpu_custom_call.1} parent=1 // loop_footer_branch
      %16 = sbr.rel target = $region3
    $region8: #{tpu_custom_call.1} parent=1 // loop_exit
      _
    %361 = vsyncpa [#allocation8], 1
    %s362 = scalar_lea.sflag [#allocation8], 1
    %363 = vsyncpa %s362, 1
    %364 = vsyncpa [#allocation11], 1
    %s365 = scalar_lea.sflag [#allocation11], 1
    %366 = vsyncpa %s365, 1
    %367 = vsyncpa [#allocation9], 1
    %s368 = scalar_lea.sflag [#allocation9], 1
    %369 = vsyncpa %s368, 1

</llo_original>
